<compile_context>
chip_gen: v7x
topology: tpu7x:2x2x1
jax: 0.10.0
libtpu: 0.0.40
codegen_flags: <defaults>
</compile_context>

<pallas_src>
import jax
import jax.numpy as jnp
from jax.experimental import pallas as pl
from jax.experimental.pallas import tpu as pltpu

EPS = 1e-5  # nn.LayerNorm default


def addnorm_kernel(x_ref, sub_ref, gamma_ref, beta_ref, o_ref):
    # x_ref, sub_ref, o_ref: (TM, D) tiles; gamma_ref/beta_ref: (1, D) f32, resident.
    # Residual add in the I/O dtype (matches torch), single cast to f32 for the math.
    s = (x_ref[...] + sub_ref[...]).astype(jnp.float32)
    inv_d = 1.0 / s.shape[-1]
    mean = jnp.sum(s, axis=-1, keepdims=True) * inv_d       # XLU reduce
    d = s - mean
    var = jnp.sum(d * d, axis=-1, keepdims=True) * inv_d    # centered variance
    scale = jax.lax.rsqrt(var + EPS) * gamma_ref[...]       # EUP rsqrt; gamma folded in
    o_ref[...] = (d * scale + beta_ref[...]).astype(o_ref.dtype)


def add_norm(x, sublayer_output, gamma, beta, *, tile_rows=4096):
    """x, sublayer_output: (B, S, D); gamma, beta: (D,). Returns (B, S, D).

    For best performance D should be a multiple of 128 (lane-dense stores).
    """
    B, S, D = x.shape
    R = B * S
    dtype = x.dtype
    itemsize = jnp.dtype(dtype).itemsize
    sub_mult = 16 if itemsize == 2 else 8  # sublane packing (bf16 vs f32)

    # Generation-aware VMEM budget: v5e/v6e have 128 MiB physical, v7x only 64 MiB.
    try:
        phys_vmem = int(pltpu.get_tpu_info().vmem_capacity_bytes)
    except Exception:  # be conservative if the query is unavailable
        phys_vmem = 64 * 1024 * 1024
    if phys_vmem > 64 * 1024 * 1024:          # v5e / v6e
        vmem_budget = 48 * 1024 * 1024
        vmem_limit = 64 * 1024 * 1024
    else:                                     # v7x or unknown: stay conservative
        vmem_budget = 28 * 1024 * 1024
        vmem_limit = 40 * 1024 * 1024

    # Per-row VMEM footprint: 3 I/O streams x double-buffer at I/O dtype,
    # plus ~3 f32 full-tile temporaries (s, d, output-cast staging).
    bytes_per_row = 6 * D * itemsize + 3 * 4 * D
    max_rows = max(sub_mult, (vmem_budget // bytes_per_row) // sub_mult * sub_mult)
    tile = min(int(tile_rows), int(max_rows))
    tile = max(sub_mult, (tile // sub_mult) * sub_mult)

    # Keep >= 4 grid steps (>= 2 per TensorCore on v7x: megacore sharding +
    # pipeline overlap) whenever tiles can stay >= ~1024 rows.
    if R >= 4 * 1024:
        tile = min(tile, max(1024, (R // 4) // sub_mult * sub_mult))

    # Never let the block row-dim exceed the array: only the standard
    # "partial last block" case remains (OOB reads padded, OOB writes masked).
    if R >= sub_mult:
        tile = min(tile, (R // sub_mult) * sub_mult)
    else:
        tile = R  # equals the full array dim -> allowed by the (8,128) rule

    grid_rows = pl.cdiv(R, tile)

    x2 = x.reshape(R, D)
    y2 = sublayer_output.reshape(R, D)
    g2 = gamma.reshape(1, D).astype(jnp.float32)
    b2 = beta.reshape(1, D).astype(jnp.float32)

    cost = pl.CostEstimate(
        flops=9 * R * D,
        transcendentals=R,
        bytes_accessed=3 * R * D * itemsize + 2 * D * 4,
    )

    out2 = pl.pallas_call(
        addnorm_kernel,
        out_shape=jax.ShapeDtypeStruct((R, D), dtype),
        grid_spec=pltpu.PrefetchScalarGridSpec(
            num_scalar_prefetch=0,
            grid=(grid_rows,),
            in_specs=[
                pl.BlockSpec((tile, D), lambda i: (i, 0)),
                pl.BlockSpec((tile, D), lambda i: (i, 0)),
                pl.BlockSpec((1, D), lambda i: (0, 0)),   # gamma: resident across grid
                pl.BlockSpec((1, D), lambda i: (0, 0)),   # beta: resident across grid
            ],
            out_specs=pl.BlockSpec((tile, D), lambda i: (i, 0)),
        ),
        compiler_params=pltpu.CompilerParams(
            # Row blocks are independent -> eligible for sharding across TCs.
            dimension_semantics=("parallel",),
            vmem_limit_bytes=vmem_limit,
        ),
        cost_estimate=cost,
    )(x2, y2, g2, b2)

    return out2.reshape(B, S, D)


def _ref_add_norm(x, y, g, b):
    s = x + y
    mean = jnp.mean(s, axis=-1, keepdims=True)
    var = jnp.mean((s - mean) ** 2, axis=-1, keepdims=True)
    return (s - mean) * jax.lax.rsqrt(var + EPS) * g + b


if __name__ == "__main__":
    B, S, D = 2, 8, 128  # d_model=128 -> lane-dense output (multiple of 128)

    key = jax.random.PRNGKey(0)
    kx, ks, kg, kb = jax.random.split(key, 4)
    x = jax.random.normal(kx, (B, S, D), dtype=jnp.float32)
    sublayer_output = jax.random.normal(ks, (B, S, D), dtype=jnp.float32)

    # Non-trivial affine params to exercise the gamma-fold / beta path
    # (nn.LayerNorm default init is weight=1, bias=0; these stay close to it).
    gamma = 1.0 + 0.1 * jax.random.normal(kg, (D,), dtype=jnp.float32)
    beta = 0.1 * jax.random.normal(kb, (D,), dtype=jnp.float32)

    out = add_norm(x, sublayer_output, gamma, beta)
    jax.block_until_ready(out)
    ref = _ref_add_norm(x, sublayer_output, gamma, beta)
    assert jnp.allclose(out, ref, atol=2e-5, rtol=2e-5)

    # Second check: B*S not a multiple of the tile -> exercises the partial
    # final block (no pad/slice HBM copies anymore).
    B2, S2 = 2, 9
    xb = jax.random.normal(kx, (B2, S2, D), dtype=jnp.float32)
    yb = jax.random.normal(ks, (B2, S2, D), dtype=jnp.float32)
    out2 = add_norm(xb, yb, gamma, beta)
    jax.block_until_ready(out2)
    ref2 = _ref_add_norm(xb, yb, gamma, beta)
    assert jnp.allclose(out2, ref2, atol=2e-5, rtol=2e-5)

    # bf16 I/O path (add in bf16, math in f32).
    xh = x.astype(jnp.bfloat16)
    yh = sublayer_output.astype(jnp.bfloat16)
    outh = add_norm(xh, yh, gamma, beta)
    jax.block_until_ready(outh)
    refh = _ref_add_norm(xh.astype(jnp.float32), yh.astype(jnp.float32), gamma, beta)
    assert jnp.allclose(outh.astype(jnp.float32), refh, atol=3e-2, rtol=3e-2)

    print("KERNEL_OK")
</pallas_src>

<mosaic_0001>
module attributes {stable_mosaic.version = 11 : i64} {
  func.func @addnorm_kernel(%arg0: i32, %arg1: memref<16x128xf32, #tpu.memory_space<vmem>>, %arg2: memref<16x128xf32, #tpu.memory_space<vmem>>, %arg3: memref<1x128xf32, #tpu.memory_space<vmem>>, %arg4: memref<1x128xf32, #tpu.memory_space<vmem>>, %arg5: memref<16x128xf32, #tpu.memory_space<vmem>>) attributes {dimension_semantics = [#tpu.dimension_semantics<parallel>], iteration_bounds = array<i64: 1>, scalar_prefetch = 0 : i64, scratch_operands = 0 : i64, tpu.core_type = #tpu.core_type<tc>, window_params = [{transform_indices = @transform_0, window_bounds = array<i64: 16, 128>}, {transform_indices = @transform_1, window_bounds = array<i64: 16, 128>}, {pipeline_mode = #tpu.pipeline_mode<synchronous>, transform_indices = @transform_2, window_bounds = array<i64: 1, 128>}, {pipeline_mode = #tpu.pipeline_mode<synchronous>, transform_indices = @transform_3, window_bounds = array<i64: 1, 128>}, {transform_indices = @transform_4, window_bounds = array<i64: 16, 128>}]} {
    %c0 = arith.constant 0 : index
    %c0_0 = arith.constant 0 : index
    %0 = vector.load %arg1[%c0, %c0_0] : memref<16x128xf32, #tpu.memory_space<vmem>>, vector<16x128xf32>
    %c0_1 = arith.constant 0 : index
    %c0_2 = arith.constant 0 : index
    %1 = vector.load %arg2[%c0_1, %c0_2] : memref<16x128xf32, #tpu.memory_space<vmem>>, vector<16x128xf32>
    %2 = arith.addf %0, %1 : vector<16x128xf32>
    %cst = arith.constant dense<0.000000e+00> : vector<16xf32>
    %3 = vector.multi_reduction <add>, %2, %cst [1] : vector<16x128xf32> to vector<16xf32>
    %4 = vector.shape_cast %3 : vector<16xf32> to vector<16x1xf32>
    %cst_3 = arith.constant 7.812500e-03 : f32
    %5 = vector.broadcast %cst_3 : f32 to vector<16x1xf32>
    %6 = arith.mulf %4, %5 : vector<16x1xf32>
    %7 = vector.broadcast %6 : vector<16x1xf32> to vector<16x128xf32>
    %8 = arith.subf %2, %7 : vector<16x128xf32>
    %9 = arith.mulf %8, %8 : vector<16x128xf32>
    %cst_4 = arith.constant dense<0.000000e+00> : vector<16xf32>
    %10 = vector.multi_reduction <add>, %9, %cst_4 [1] : vector<16x128xf32> to vector<16xf32>
    %11 = vector.shape_cast %10 : vector<16xf32> to vector<16x1xf32>
    %cst_5 = arith.constant 7.812500e-03 : f32
    %12 = vector.broadcast %cst_5 : f32 to vector<16x1xf32>
    %13 = arith.mulf %11, %12 : vector<16x1xf32>
    %cst_6 = arith.constant 9.99999974E-6 : f32
    %14 = vector.broadcast %cst_6 : f32 to vector<16x1xf32>
    %15 = arith.addf %13, %14 : vector<16x1xf32>
    %16 = math.rsqrt %15 : vector<16x1xf32>
    %c0_7 = arith.constant 0 : index
    %c0_8 = arith.constant 0 : index
    %17 = vector.load %arg3[%c0_7, %c0_8] : memref<1x128xf32, #tpu.memory_space<vmem>>, vector<1x128xf32>
    %18 = vector.broadcast %16 : vector<16x1xf32> to vector<16x128xf32>
    %19 = vector.broadcast %17 : vector<1x128xf32> to vector<16x128xf32>
    %20 = arith.mulf %18, %19 : vector<16x128xf32>
    %21 = arith.mulf %8, %20 : vector<16x128xf32>
    %c0_9 = arith.constant 0 : index
    %c0_10 = arith.constant 0 : index
    %22 = vector.load %arg4[%c0_9, %c0_10] : memref<1x128xf32, #tpu.memory_space<vmem>>, vector<1x128xf32>
    %23 = vector.broadcast %22 : vector<1x128xf32> to vector<16x128xf32>
    %24 = arith.addf %21, %23 : vector<16x128xf32>
    %c0_11 = arith.constant 0 : index
    %c0_12 = arith.constant 0 : index
    %25 = vector.load %arg5[%c0_11, %c0_12] : memref<16x128xf32, #tpu.memory_space<vmem>>, vector<16x128xf32>
    tpu.vector_store %arg5[%c0_11, %c0_12], %24 {strides = array<i32>} : memref<16x128xf32, #tpu.memory_space<vmem>>, vector<16x128xf32>,
    return
  }
  func.func @transform_0(%arg0: i32) -> (i32, i32) {
    %c0_i32 = arith.constant 0 : i32
    %c0_i32_0 = arith.constant 0 : i32
    return %arg0, %c0_i32 : i32, i32
  }
  func.func @transform_1(%arg0: i32) -> (i32, i32) {
    %c0_i32 = arith.constant 0 : i32
    %c0_i32_0 = arith.constant 0 : i32
    return %arg0, %c0_i32 : i32, i32
  }
  func.func @transform_2(%arg0: i32) -> (i32, i32) {
    %c0_i32 = arith.constant 0 : i32
    %c0_i32_0 = arith.constant 0 : i32
    %c0_i32_1 = arith.constant 0 : i32
    return %c0_i32, %c0_i32_0 : i32, i32
  }
  func.func @transform_3(%arg0: i32) -> (i32, i32) {
    %c0_i32 = arith.constant 0 : i32
    %c0_i32_0 = arith.constant 0 : i32
    %c0_i32_1 = arith.constant 0 : i32
    return %c0_i32, %c0_i32_0 : i32, i32
  }
  func.func @transform_4(%arg0: i32) -> (i32, i32) {
    %c0_i32 = arith.constant 0 : i32
    %c0_i32_0 = arith.constant 0 : i32
    return %arg0, %c0_i32 : i32, i32
  }
}

</mosaic_0001>

<llo_original>
// kernel: tpu_custom_call.1
$region0: #{tpu_custom_call.1}
  #allocation0 [shape = 'u32[]', space=smem, size = 0x4, offset = 0x4, fixed_abs, tag = 'smem constant byte address 0x4 - core index']
  #allocation1 [shape = 'u32[144,128]{1,0:T(1,128)}', space=vmem, size = 0x12000, scoped, tag = 'internal scratch']
  %s0 = inlined_call_operand.hbm [shape: f32[16,128], index: 0, kind: input, shape index: {}]
  %s1 = inlined_call_operand.hbm [shape: f32[16,128], index: 1, kind: input, shape index: {}]
  %s2 = inlined_call_operand.vmem [shape: f32[1,128], index: 2, kind: input, shape index: {}]
  %s3 = inlined_call_operand.vmem [shape: f32[1,128], index: 3, kind: input, shape index: {}]
  %s4 = inlined_call_operand.hbm [shape: f32[16,128], index: 4, kind: output, shape index: {}]
  %s5 = sld [smem:[#allocation0]]
  $region34: #{tpu_custom_call.1} parent=0
    _
  %s7 = ssub.s32 1, %s5
  %s8 = scalar_select 0, %s7, %s5
  $region1: #{tpu_custom_call.1} parent=0
    #allocation2 [shape = 'u8[8192]{0}', space=vmem, size = 0x2000, scoped, tag = 'input window, operand 0, single buffered']
    #allocation3 [shape = 's32[1]{0}', space=sflag, size = 0x4, scoped, tag = 'scoped memory for tpu_custom_call.1']
    #allocation4 [shape = 's32[1]{0}', space=sflag, size = 0x4, scoped, tag = 'scoped memory for tpu_custom_call.1']
    #allocation5 [shape = 'u8[8192]{0}', space=vmem, size = 0x2000, scoped, tag = 'input window, operand 1, single buffered']
    #allocation6 [shape = 's32[1]{0}', space=sflag, size = 0x4, scoped, tag = 'scoped memory for tpu_custom_call.1']
    #allocation7 [shape = 'u8[8192]{0}', space=vmem, size = 0x2000, scoped, tag = 'output window, operand 0, single buffered']
    %9 = vsyncpa [#allocation3], 0
    %10 = vsyncpa [#allocation6], 0
    %11 = vsyncpa [#allocation4], 0
    // Predicated region
    $region2: #{tpu_custom_call.1} parent=1 // pred_check
      _
    $region3: #{tpu_custom_call.1} parent=1 // pred_check_branch
      %13 = sbr.rel (0) target = $region5
    $region4: #{tpu_custom_call.1} parent=1 // pred_region
      %s15 = ssub.s32 256, 256
      %16 = vsyncadd [#allocation3], %s15
      %s17 = sshll.u32 [#allocation2], 4
      %s18 = int_to_ptr.vmem [resolvable:$true] %s17
      %23 = dma.hbm_to_vmem [thread:$0]  %s0, 256, %s18, [#allocation3], 128, 128, 8
    $region5: #{tpu_custom_call.1} parent=1 // pred_fallthru
      _
    // Predicated region
    $region6: #{tpu_custom_call.1} parent=1 // pred_check
      _
    $region7: #{tpu_custom_call.1} parent=1 // pred_check_branch
      %25 = sbr.rel (0) target = $region9
    $region8: #{tpu_custom_call.1} parent=1 // pred_region
      %s27 = ssub.s32 256, 256
      %28 = vsyncadd [#allocation6], %s27
      %s29 = sshll.u32 [#allocation5], 4
      %s30 = int_to_ptr.vmem [resolvable:$true] %s29
      %35 = dma.hbm_to_vmem [thread:$0]  %s1, 256, %s30, [#allocation6], 128, 128, 8
    $region9: #{tpu_custom_call.1} parent=1 // pred_fallthru
      _
    // Predicated region
    $region10: #{tpu_custom_call.1} parent=1 // pred_check
      _
    $region11: #{tpu_custom_call.1} parent=1 // pred_check_branch
      %37 = sbr.rel (0) target = $region13
    $region12: #{tpu_custom_call.1} parent=1 // pred_region
      _
    $region13: #{tpu_custom_call.1} parent=1 // pred_fallthru
      _
    // Predicated region
    $region14: #{tpu_custom_call.1} parent=1 // pred_check
      _
    $region15: #{tpu_custom_call.1} parent=1 // pred_check_branch
      %39 = sbr.rel (0) target = $region17
    $region16: #{tpu_custom_call.1} parent=1 // pred_region
      _
    $region17: #{tpu_custom_call.1} parent=1 // pred_fallthru
      _
    // Predicated region
    $region18: #{tpu_custom_call.1} parent=1 // pred_check
      _
    $region19: #{tpu_custom_call.1} parent=1 // pred_check_branch
      %41 = sbr.rel (0) target = $region21
    $region20: #{tpu_custom_call.1} parent=1 // pred_region
      %42 = dma.done [#allocation3], 256
    $region21: #{tpu_custom_call.1} parent=1 // pred_fallthru
      _
    // Predicated region
    $region22: #{tpu_custom_call.1} parent=1 // pred_check
      _
    $region23: #{tpu_custom_call.1} parent=1 // pred_check_branch
      %44 = sbr.rel (0) target = $region25
    $region24: #{tpu_custom_call.1} parent=1 // pred_region
      %45 = dma.done [#allocation6], 256
    $region25: #{tpu_custom_call.1} parent=1 // pred_fallthru
      _
    %v46 = vld [vmem:[#allocation2] sm:$0xff]
    %v47 = vld [vmem:[#allocation2 + $0x8] sm:$0xff]
    %v48 = vld [vmem:[#allocation5] sm:$0xff]
    %v49 = vld [vmem:[#allocation5 + $0x8] sm:$0xff]
    %v50 = vadd.f32 %v46, %v48
    %v51 = vadd.f32 %v47, %v49
    %52 = vadd.xlane.f32.xlu0 %v50
    %v53 = vpop.xlane.xlu0 %52
    %54 = vadd.xlane.f32.xlu0 %v51
    %v55 = vpop.xlane.xlu0 %54
    %v56 = vmul.f32 %v53, 0.0078125
    %v57 = vmul.f32 %v55, 0.0078125
    %v58 = vsub.f32 %v50, %v56
    %v59 = vsub.f32 %v51, %v57
    %v60 = vmul.f32 %v58, %v58
    %v61 = vmul.f32 %v59, %v59
    %62 = vadd.xlane.f32.xlu0 %v60
    %v63 = vpop.xlane.xlu0 %62
    %64 = vadd.xlane.f32.xlu0 %v61
    %v65 = vpop.xlane.xlu0 %64
    %v66 = vmul.f32 %v63, 0.0078125
    %v67 = vmul.f32 %v65, 0.0078125
    %v68 = vadd.f32 %v66, 1e-05
    %v69 = vadd.f32 %v67, 1e-05
    %v70 = vrsqrt.pop %v68
    %v71 = vrsqrt.pop %v69
    %v72 = vld [vmem:[%s2] sm:$0x1]
    %v74 = vlaneseq
    %v75 = vshrl.u32 %v74, 7
    %v76 = vsub.s32 0, %v75
    %v77 = vrot.slane %v72, %v76
    %v79 = vmul.f32 %v70, %v77
    %v80 = vmul.f32 %v71, %v77
    %v81 = vmul.f32 %v58, %v79
    %v82 = vmul.f32 %v59, %v80
    %v83 = vld [vmem:[%s3] sm:$0x1]
    %v85 = vlaneseq
    %v86 = vshrl.u32 %v85, 7
    %v87 = vsub.s32 0, %v86
    %v88 = vrot.slane %v83, %v87
    %v90 = vadd.f32 %v81, %v88
    %v91 = vadd.f32 %v82, %v88
    %92 = vst [vmem:[#allocation7] sm:$0xff] %v90
    %93 = vst [vmem:[#allocation7 + $0x8] sm:$0xff] %v91
    // Predicated region
    $region26: #{tpu_custom_call.1} parent=1 // pred_check
      _
    $region27: #{tpu_custom_call.1} parent=1 // pred_check_branch
      %95 = sbr.rel (0) target = $region29
    $region28: #{tpu_custom_call.1} parent=1 // pred_region
      %s97 = ssub.s32 256, 256
      %98 = vsyncadd [#allocation4], %s97
      %s99 = sshll.u32 [#allocation7], 4
      %s100 = int_to_ptr.vmem [resolvable:$true] %s99
      %105 = dma.vmem_to_hbm [thread:$0]  %s100, 256, %s4, [#allocation4], 128, 128, 8
    $region29: #{tpu_custom_call.1} parent=1 // pred_fallthru
      _
    // Predicated region
    $region30: #{tpu_custom_call.1} parent=1 // pred_check
      _
    $region31: #{tpu_custom_call.1} parent=1 // pred_check_branch
      %107 = sbr.rel (0) target = $region33
    $region32: #{tpu_custom_call.1} parent=1 // pred_region
      %108 = dma.done [#allocation4], 256
    $region33: #{tpu_custom_call.1} parent=1 // pred_fallthru
      _
    %109 = vsyncpa [#allocation3], 1
    %110 = vsyncpa [#allocation6], 1
    %111 = vsyncpa [#allocation4], 1

</llo_original>
